<compile_context>
chip_gen: v5e
topology: v5e:2x2
jax: 0.10.0
libtpu: 0.0.40
codegen_flags: <defaults>
</compile_context>

<pallas_src>
import functools

import jax
import jax.numpy as jnp
from jax.experimental import pallas as pl
from jax.experimental.pallas import tpu as pltpu


def _round_up(n, m):
    return ((n + m - 1) // m) * m


def mlp_kernel(x_ref, w_emb_ref, b_emb_ref, w_hid_ref, b_hid_ref,
               w_fin_ref, b_fin_ref, o_ref, *, num_layer, compute_dtype):
    # Embedding layer (no activation, matching the PyTorch forward).
    h = jnp.dot(x_ref[...], w_emb_ref[...],
                preferred_element_type=jnp.float32) + b_emb_ref[...]
    # Hidden layers: Linear + ReLU (statically unrolled). MXU operands in
    # compute_dtype, accumulation + elementwise stay f32.
    for i in range(num_layer):
        h = jnp.dot(h.astype(compute_dtype), w_hid_ref[i],
                    preferred_element_type=jnp.float32) + b_hid_ref[i]
        h = jnp.maximum(h, 0.0)
    # Final (H -> 1) projection as a VPU broadcast-mul + lane reduction,
    # stored lane-dense as a (1, 1, tile_m) row.
    dot = jnp.sum(h * w_fin_ref[...], axis=-1)              # (tile_m,) f32
    o_ref[...] = (dot.reshape(1, 1, -1) + b_fin_ref[...]).astype(o_ref.dtype)


def mlp_forward(x, params, *, num_layer, tile_m=256,
                compute_dtype=jnp.float32):
    """x: (B, E) float32. Returns (B, 1) float32."""
    w_emb, b_emb, w_hid, b_hid, w_fin, b_fin = params
    B, E = x.shape
    H = w_emb.shape[1]
    L = w_hid.shape[0]
    assert L == num_layer

    # Lane-dense batch tile: a multiple of 128, no bigger than the padded batch.
    tile_m = max(128, min(_round_up(tile_m, 128), _round_up(B, 128)))
    Bp = _round_up(B, tile_m)
    if Bp != B:
        x = jnp.pad(x, ((0, Bp - B), (0, 0)))
    num_tiles = Bp // tile_m

    # MXU operands in compute_dtype; biases and the final weight stay f32.
    x_c = x.astype(compute_dtype)
    w_emb_c = w_emb.astype(compute_dtype)
    w_hid_c = w_hid.astype(compute_dtype)
    b_emb_f = b_emb.astype(jnp.float32)
    b_hid_f = b_hid.astype(jnp.float32)
    w_fin_f = w_fin.reshape(1, H).astype(jnp.float32)
    b_fin_f = b_fin.reshape(1, 1).astype(jnp.float32)

    kernel = functools.partial(mlp_kernel, num_layer=num_layer,
                               compute_dtype=compute_dtype)

    itemsize = jnp.dtype(compute_dtype).itemsize
    flops = 2 * Bp * (E * H + L * H * H + H)
    bytes_accessed = (Bp * E * itemsize                      # x
                      + (E * H + L * H * H) * itemsize       # matmul weights
                      + (H + L * H + H + 1) * 4              # biases + w_fin
                      + Bp * 4)                              # output

    # Weights/biases: whole-array VMEM residents (no double buffering).
    resident = pl.BlockSpec(memory_space=pltpu.MemorySpace.VMEM)

    out3d = pl.pallas_call(
        kernel,
        out_shape=jax.ShapeDtypeStruct((num_tiles, 1, tile_m), jnp.float32),
        grid_spec=pltpu.PrefetchScalarGridSpec(
            num_scalar_prefetch=0,
            grid=(num_tiles,),
            in_specs=[
                pl.BlockSpec((tile_m, E), lambda i: (i, 0)),  # x tile (pipelined)
                resident,                                     # W_emb
                resident,                                     # b_emb
                resident,                                     # W_hidden stack
                resident,                                     # b_hidden stack
                resident,                                     # w_fin (1, H)
                resident,                                     # b_fin (1, 1)
            ],
            out_specs=pl.BlockSpec((1, 1, tile_m), lambda i: (i, 0, 0)),
        ),
        compiler_params=pltpu.CompilerParams(
            dimension_semantics=("parallel",),
            vmem_limit_bytes=32 * 1024 * 1024),
        cost_estimate=pl.CostEstimate(flops=flops, transcendentals=0,
                                      bytes_accessed=bytes_accessed),
    )(x_c, w_emb_c, b_emb_f, w_hid_c, b_hid_f, w_fin_f, b_fin_f)

    # (num_tiles, 1, tile_m) -> (Bp, 1) -> strip padding rows.
    return out3d.reshape(Bp, 1)[:B]


def init_params(key, embedding_size, num_hidden, num_layer):
    """Deterministic init mimicking PyTorch Linear (uniform +-1/sqrt(fan_in)).
    Weights are stored as (in, out) so the kernel computes x @ W + b."""
    ks = jax.random.split(key, 6)

    def u(k, shape, fan_in):
        bound = 1.0 / jnp.sqrt(fan_in)
        return jax.random.uniform(k, shape, jnp.float32, -bound, bound)

    w_emb = u(ks[0], (embedding_size, num_hidden), embedding_size)
    b_emb = u(ks[1], (1, num_hidden), embedding_size)
    w_hid = u(ks[2], (num_layer, num_hidden, num_hidden), num_hidden)
    b_hid = u(ks[3], (num_layer, 1, num_hidden), num_hidden)
    w_fin = u(ks[4], (num_hidden, 1), num_hidden)
    b_fin = u(ks[5], (1, 1), num_hidden)
    return (w_emb, b_emb, w_hid, b_hid, w_fin, b_fin)


def mlp_reference(x, params, num_layer):
    w_emb, b_emb, w_hid, b_hid, w_fin, b_fin = params
    h = x @ w_emb + b_emb
    for i in range(num_layer):
        h = jnp.maximum(h @ w_hid[i] + b_hid[i], 0.0)
    return h @ w_fin + b_fin


if __name__ == "__main__":
    embedding_size, num_hidden, num_layer = 16, 32, 3
    batch = 16

    key = jax.random.PRNGKey(0)
    k_x, k_p = jax.random.split(key)
    x = jax.random.normal(k_x, (batch, embedding_size), jnp.float32)
    params = init_params(k_p, embedding_size, num_layer=num_layer,
                         num_hidden=num_hidden)

    ref = mlp_reference(x, params, num_layer)

    # f32 compute path (exact-ish): tight tolerance.
    out = mlp_forward(x, params, num_layer=num_layer,
                      compute_dtype=jnp.float32)
    out = jax.block_until_ready(out)
    assert out.shape == (batch, 1), out.shape
    assert jnp.allclose(out, ref, atol=1e-5, rtol=1e-5), "f32 mismatch"

    # bf16 MXU-operand path (v6e/v7x recommended): looser tolerance.
    out_bf16 = mlp_forward(x, params, num_layer=num_layer,
                           compute_dtype=jnp.bfloat16)
    out_bf16 = jax.block_until_ready(out_bf16)
    assert out_bf16.shape == (batch, 1), out_bf16.shape
    assert jnp.allclose(out_bf16, ref, atol=5e-2, rtol=5e-2), "bf16 mismatch"

    print("KERNEL_OK")
</pallas_src>

<mosaic_0001>
module attributes {stable_mosaic.version = 11 : i64} {
  func.func @mlp_kernel(%arg0: i32, %arg1: memref<128x16xf32, #tpu.memory_space<vmem>>, %arg2: memref<16x32xf32, #tpu.memory_space<vmem>>, %arg3: memref<1x32xf32, #tpu.memory_space<vmem>>, %arg4: memref<3x32x32xf32, #tpu.memory_space<vmem>>, %arg5: memref<3x1x32xf32, #tpu.memory_space<vmem>>, %arg6: memref<1x32xf32, #tpu.memory_space<vmem>>, %arg7: memref<1x1xf32, #tpu.memory_space<vmem>>, %arg8: memref<1x1x128xf32, #tpu.memory_space<vmem>>) attributes {dimension_semantics = [#tpu.dimension_semantics<parallel>], iteration_bounds = array<i64: 1>, scalar_prefetch = 0 : i64, scratch_operands = 0 : i64, tpu.core_type = #tpu.core_type<tc>, window_params = [{transform_indices = @transform_0, window_bounds = array<i64: 128, 16>}, {pipeline_mode = #tpu.pipeline_mode<synchronous>, transform_indices = @transform_1, window_bounds = array<i64: 16, 32>}, {pipeline_mode = #tpu.pipeline_mode<synchronous>, transform_indices = @transform_2, window_bounds = array<i64: 1, 32>}, {pipeline_mode = #tpu.pipeline_mode<synchronous>, transform_indices = @transform_3, window_bounds = array<i64: 3, 32, 32>}, {pipeline_mode = #tpu.pipeline_mode<synchronous>, transform_indices = @transform_4, window_bounds = array<i64: 3, 1, 32>}, {pipeline_mode = #tpu.pipeline_mode<synchronous>, transform_indices = @transform_5, window_bounds = array<i64: 1, 32>}, {pipeline_mode = #tpu.pipeline_mode<synchronous>, transform_indices = @transform_6, window_bounds = array<i64: 1, 1>}, {transform_indices = @transform_7, window_bounds = array<i64: 1, 1, 128>}]} {
    %c0 = arith.constant 0 : index
    %c0_0 = arith.constant 0 : index
    %0 = vector.load %arg1[%c0, %c0_0] : memref<128x16xf32, #tpu.memory_space<vmem>>, vector<128x16xf32>
    %c0_1 = arith.constant 0 : index
    %c0_2 = arith.constant 0 : index
    %1 = vector.load %arg2[%c0_1, %c0_2] : memref<16x32xf32, #tpu.memory_space<vmem>>, vector<16x32xf32>
    %cst = arith.constant dense<0.000000e+00> : vector<128x32xf32>
    %2 = tpu.matmul %0, %1, %cst {dimension_numbers = #tpu.dot_dimension_numbers<[1], [0], [0], [1], [0, 0, 1, 1], [], []>} : vector<128x16xf32>, vector<16x32xf32>, vector<128x32xf32> -> vector<128x32xf32>
    %c0_3 = arith.constant 0 : index
    %c0_4 = arith.constant 0 : index
    %3 = vector.load %arg3[%c0_3, %c0_4] : memref<1x32xf32, #tpu.memory_space<vmem>>, vector<1x32xf32>
    %4 = vector.broadcast %3 : vector<1x32xf32> to vector<128x32xf32>
    %5 = arith.addf %2, %4 : vector<128x32xf32>
    %c0_5 = arith.constant 0 : index
    %c0_6 = arith.constant 0 : index
    %c0_7 = arith.constant 0 : index
    %6 = vector.load %arg4[%c0_5, %c0_6, %c0_7] : memref<3x32x32xf32, #tpu.memory_space<vmem>>, vector<1x32x32xf32>
    %7 = vector.shape_cast %6 : vector<1x32x32xf32> to vector<32x32xf32>
    %cst_8 = arith.constant dense<0.000000e+00> : vector<128x32xf32>
    %8 = tpu.matmul %5, %7, %cst_8 {dimension_numbers = #tpu.dot_dimension_numbers<[1], [0], [0], [1], [0, 0, 1, 1], [], []>} : vector<128x32xf32>, vector<32x32xf32>, vector<128x32xf32> -> vector<128x32xf32>
    %c0_9 = arith.constant 0 : index
    %c0_10 = arith.constant 0 : index
    %c0_11 = arith.constant 0 : index
    %9 = vector.load %arg5[%c0_9, %c0_10, %c0_11] : memref<3x1x32xf32, #tpu.memory_space<vmem>>, vector<1x1x32xf32>
    %10 = vector.shape_cast %9 : vector<1x1x32xf32> to vector<1x32xf32>
    %11 = vector.broadcast %10 : vector<1x32xf32> to vector<128x32xf32>
    %12 = arith.addf %8, %11 : vector<128x32xf32>
    %cst_12 = arith.constant 0.000000e+00 : f32
    %13 = vector.broadcast %cst_12 : f32 to vector<128x32xf32>
    %14 = arith.maximumf %12, %13 : vector<128x32xf32>
    %c1 = arith.constant 1 : index
    %c0_13 = arith.constant 0 : index
    %c0_14 = arith.constant 0 : index
    %15 = vector.load %arg4[%c1, %c0_13, %c0_14] : memref<3x32x32xf32, #tpu.memory_space<vmem>>, vector<1x32x32xf32>
    %16 = vector.shape_cast %15 : vector<1x32x32xf32> to vector<32x32xf32>
    %cst_15 = arith.constant dense<0.000000e+00> : vector<128x32xf32>
    %17 = tpu.matmul %14, %16, %cst_15 {dimension_numbers = #tpu.dot_dimension_numbers<[1], [0], [0], [1], [0, 0, 1, 1], [], []>} : vector<128x32xf32>, vector<32x32xf32>, vector<128x32xf32> -> vector<128x32xf32>
    %c1_16 = arith.constant 1 : index
    %c0_17 = arith.constant 0 : index
    %c0_18 = arith.constant 0 : index
    %18 = vector.load %arg5[%c1_16, %c0_17, %c0_18] : memref<3x1x32xf32, #tpu.memory_space<vmem>>, vector<1x1x32xf32>
    %19 = vector.shape_cast %18 : vector<1x1x32xf32> to vector<1x32xf32>
    %20 = vector.broadcast %19 : vector<1x32xf32> to vector<128x32xf32>
    %21 = arith.addf %17, %20 : vector<128x32xf32>
    %cst_19 = arith.constant 0.000000e+00 : f32
    %22 = vector.broadcast %cst_19 : f32 to vector<128x32xf32>
    %23 = arith.maximumf %21, %22 : vector<128x32xf32>
    %c2 = arith.constant 2 : index
    %c0_20 = arith.constant 0 : index
    %c0_21 = arith.constant 0 : index
    %24 = vector.load %arg4[%c2, %c0_20, %c0_21] : memref<3x32x32xf32, #tpu.memory_space<vmem>>, vector<1x32x32xf32>
    %25 = vector.shape_cast %24 : vector<1x32x32xf32> to vector<32x32xf32>
    %cst_22 = arith.constant dense<0.000000e+00> : vector<128x32xf32>
    %26 = tpu.matmul %23, %25, %cst_22 {dimension_numbers = #tpu.dot_dimension_numbers<[1], [0], [0], [1], [0, 0, 1, 1], [], []>} : vector<128x32xf32>, vector<32x32xf32>, vector<128x32xf32> -> vector<128x32xf32>
    %c2_23 = arith.constant 2 : index
    %c0_24 = arith.constant 0 : index
    %c0_25 = arith.constant 0 : index
    %27 = vector.load %arg5[%c2_23, %c0_24, %c0_25] : memref<3x1x32xf32, #tpu.memory_space<vmem>>, vector<1x1x32xf32>
    %28 = vector.shape_cast %27 : vector<1x1x32xf32> to vector<1x32xf32>
    %29 = vector.broadcast %28 : vector<1x32xf32> to vector<128x32xf32>
    %30 = arith.addf %26, %29 : vector<128x32xf32>
    %cst_26 = arith.constant 0.000000e+00 : f32
    %31 = vector.broadcast %cst_26 : f32 to vector<128x32xf32>
    %32 = arith.maximumf %30, %31 : vector<128x32xf32>
    %c0_27 = arith.constant 0 : index
    %c0_28 = arith.constant 0 : index
    %33 = vector.load %arg6[%c0_27, %c0_28] : memref<1x32xf32, #tpu.memory_space<vmem>>, vector<1x32xf32>
    %34 = vector.broadcast %33 : vector<1x32xf32> to vector<128x32xf32>
    %35 = arith.mulf %32, %34 : vector<128x32xf32>
    %cst_29 = arith.constant dense<0.000000e+00> : vector<128xf32>
    %36 = vector.multi_reduction <add>, %35, %cst_29 [1] : vector<128x32xf32> to vector<128xf32>
    %37 = vector.shape_cast %36 : vector<128xf32> to vector<1x1x128xf32>
    %c0_30 = arith.constant 0 : index
    %c0_31 = arith.constant 0 : index
    %38 = vector.load %arg7[%c0_30, %c0_31] : memref<1x1xf32, #tpu.memory_space<vmem>>, vector<1x1xf32>
    %39 = vector.shape_cast %38 : vector<1x1xf32> to vector<1x1x1xf32>
    %40 = vector.broadcast %39 : vector<1x1x1xf32> to vector<1x1x128xf32>
    %41 = arith.addf %37, %40 : vector<1x1x128xf32>
    %c0_32 = arith.constant 0 : index
    %c0_33 = arith.constant 0 : index
    %c0_34 = arith.constant 0 : index
    %42 = vector.load %arg8[%c0_32, %c0_33, %c0_34] : memref<1x1x128xf32, #tpu.memory_space<vmem>>, vector<1x1x128xf32>
    tpu.vector_store %arg8[%c0_32, %c0_33, %c0_34], %41 {strides = array<i32>} : memref<1x1x128xf32, #tpu.memory_space<vmem>>, vector<1x1x128xf32>,
    return
  }
  func.func @transform_0(%arg0: i32) -> (i32, i32) {
    %c0_i32 = arith.constant 0 : i32
    %c0_i32_0 = arith.constant 0 : i32
    return %arg0, %c0_i32 : i32, i32
  }
  func.func @transform_1(%arg0: i32) -> (i32, i32) {
    %c0_i32 = arith.constant 0 : i32
    %c0_i32_0 = arith.constant 0 : i32
    %c0_i32_1 = arith.constant 0 : i32
    return %c0_i32, %c0_i32_0 : i32, i32
  }
  func.func @transform_2(%arg0: i32) -> (i32, i32) {
    %c0_i32 = arith.constant 0 : i32
    %c0_i32_0 = arith.constant 0 : i32
    %c0_i32_1 = arith.constant 0 : i32
    return %c0_i32, %c0_i32_0 : i32, i32
  }
  func.func @transform_3(%arg0: i32) -> (i32, i32, i32) {
    %c0_i32 = arith.constant 0 : i32
    %c0_i32_0 = arith.constant 0 : i32
    %c0_i32_1 = arith.constant 0 : i32
    %c0_i32_2 = arith.constant 0 : i32
    return %c0_i32, %c0_i32_0, %c0_i32_1 : i32, i32, i32
  }
  func.func @transform_4(%arg0: i32) -> (i32, i32, i32) {
    %c0_i32 = arith.constant 0 : i32
    %c0_i32_0 = arith.constant 0 : i32
    %c0_i32_1 = arith.constant 0 : i32
    %c0_i32_2 = arith.constant 0 : i32
    return %c0_i32, %c0_i32_0, %c0_i32_1 : i32, i32, i32
  }
  func.func @transform_5(%arg0: i32) -> (i32, i32) {
    %c0_i32 = arith.constant 0 : i32
    %c0_i32_0 = arith.constant 0 : i32
    %c0_i32_1 = arith.constant 0 : i32
    return %c0_i32, %c0_i32_0 : i32, i32
  }
  func.func @transform_6(%arg0: i32) -> (i32, i32) {
    %c0_i32 = arith.constant 0 : i32
    %c0_i32_0 = arith.constant 0 : i32
    %c0_i32_1 = arith.constant 0 : i32
    return %c0_i32, %c0_i32_0 : i32, i32
  }
  func.func @transform_7(%arg0: i32) -> (i32, i32, i32) {
    %c0_i32 = arith.constant 0 : i32
    %c0_i32_0 = arith.constant 0 : i32
    %c0_i32_1 = arith.constant 0 : i32
    return %arg0, %c0_i32, %c0_i32_0 : i32, i32, i32
  }
}

</mosaic_0001>

<llo_original>
// kernel: tpu_custom_call.1
$region0: #{tpu_custom_call.1}
  #allocation0 [shape = 'u32[]', space=smem, size = 0x4, offset = 0x4, fixed_abs, tag = 'smem constant byte address 0x4 - core index']
  #allocation1 [shape = 'u32[72,128]{1,0:T(1,128)}', space=vmem, size = 0x9000, scoped, tag = 'internal scratch']
  #allocation2 [shape = 'f32[1,1]{1,0:T(1,128)S(1)}', space=vmem, size = 0x200, scoped, tag = 'scoped memory for tpu_custom_call.1']
  %s0 = inlined_call_operand.vmem [shape: f32[128,16], index: 0, kind: input, shape index: {}]
  %s1 = inlined_call_operand.vmem [shape: f32[16,32], index: 1, kind: input, shape index: {}]
  %s2 = inlined_call_operand.vmem [shape: f32[1,32], index: 2, kind: input, shape index: {}]
  %s3 = inlined_call_operand.vmem [shape: f32[3,32,32], index: 3, kind: input, shape index: {}]
  %s4 = inlined_call_operand.vmem [shape: f32[3,1,32], index: 4, kind: input, shape index: {}]
  %s5 = inlined_call_operand.vmem [shape: f32[1,32], index: 5, kind: input, shape index: {}]
  %s6 = inlined_call_operand.<no memory space> [shape: f32[1,1], index: 6, kind: input, shape index: {}]
  %s7 = inlined_call_operand.hbm [shape: f32[1,1,128], index: 7, kind: output, shape index: {}]
  %s8 = sld [smem:[#allocation0]]
  $region38: #{tpu_custom_call.1} parent=0
    _
  %s10 = ssub.s32 1, %s8
  %s11 = scalar_select 0, %s10, %s8
  %v12 = vstv %s6
  %13 = vst [vmem:[#allocation2] sm:$0x1] %v12
  $region1: #{tpu_custom_call.1} parent=0
    #allocation3 [shape = 'u8[512]{0}', space=vmem, size = 0x400, scoped, tag = 'output window, operand 0, single buffered']
    #allocation4 [shape = 's32[1]{0}', space=sflag, size = 0x4, scoped, tag = 'scoped memory for tpu_custom_call.1']
    %14 = vsyncpa [#allocation4], 0
    // Predicated region
    $region2: #{tpu_custom_call.1} parent=1 // pred_check
      _
    $region3: #{tpu_custom_call.1} parent=1 // pred_check_branch
      %16 = sbr.rel (0) target = $region5
    $region4: #{tpu_custom_call.1} parent=1 // pred_region
      _
    $region5: #{tpu_custom_call.1} parent=1 // pred_fallthru
      _
    // Predicated region
    $region6: #{tpu_custom_call.1} parent=1 // pred_check
      _
    $region7: #{tpu_custom_call.1} parent=1 // pred_check_branch
      %18 = sbr.rel (0) target = $region9
    $region8: #{tpu_custom_call.1} parent=1 // pred_region
      _
    $region9: #{tpu_custom_call.1} parent=1 // pred_fallthru
      _
    // Predicated region
    $region10: #{tpu_custom_call.1} parent=1 // pred_check
      _
    $region11: #{tpu_custom_call.1} parent=1 // pred_check_branch
      %20 = sbr.rel (0) target = $region13
    $region12: #{tpu_custom_call.1} parent=1 // pred_region
      _
    $region13: #{tpu_custom_call.1} parent=1 // pred_fallthru
      _
    // Predicated region
    $region14: #{tpu_custom_call.1} parent=1 // pred_check
      _
    $region15: #{tpu_custom_call.1} parent=1 // pred_check_branch
      %22 = sbr.rel (0) target = $region17
    $region16: #{tpu_custom_call.1} parent=1 // pred_region
      _
    $region17: #{tpu_custom_call.1} parent=1 // pred_fallthru
      _
    // Predicated region
    $region18: #{tpu_custom_call.1} parent=1 // pred_check
      _
    $region19: #{tpu_custom_call.1} parent=1 // pred_check_branch
      %24 = sbr.rel (0) target = $region21
    $region20: #{tpu_custom_call.1} parent=1 // pred_region
      _
    $region21: #{tpu_custom_call.1} parent=1 // pred_fallthru
      _
    // Predicated region
    $region22: #{tpu_custom_call.1} parent=1 // pred_check
      _
    $region23: #{tpu_custom_call.1} parent=1 // pred_check_branch
      %26 = sbr.rel (0) target = $region25
    $region24: #{tpu_custom_call.1} parent=1 // pred_region
      _
    $region25: #{tpu_custom_call.1} parent=1 // pred_fallthru
      _
    // Predicated region
    $region26: #{tpu_custom_call.1} parent=1 // pred_check
      _
    $region27: #{tpu_custom_call.1} parent=1 // pred_check_branch
      %28 = sbr.rel (0) target = $region29
    $region28: #{tpu_custom_call.1} parent=1 // pred_region
      _
    $region29: #{tpu_custom_call.1} parent=1 // pred_fallthru
      _
    %v29 = vld [vmem:[%s0] sm:$0xff]
    %v30 = vld [vmem:[%s0 + $0x8] sm:$0xff]
    %v31 = vld [vmem:[%s0 + $0x10] sm:$0xff]
    %v32 = vld [vmem:[%s0 + $0x18] sm:$0xff]
    %v33 = vld [vmem:[%s0 + $0x20] sm:$0xff]
    %v34 = vld [vmem:[%s0 + $0x28] sm:$0xff]
    %v35 = vld [vmem:[%s0 + $0x30] sm:$0xff]
    %v36 = vld [vmem:[%s0 + $0x38] sm:$0xff]
    %v37 = vld [vmem:[%s0 + $0x40] sm:$0xff]
    %v38 = vld [vmem:[%s0 + $0x48] sm:$0xff]
    %v39 = vld [vmem:[%s0 + $0x50] sm:$0xff]
    %v40 = vld [vmem:[%s0 + $0x58] sm:$0xff]
    %v41 = vld [vmem:[%s0 + $0x60] sm:$0xff]
    %v42 = vld [vmem:[%s0 + $0x68] sm:$0xff]
    %v43 = vld [vmem:[%s0 + $0x70] sm:$0xff]
    %v44 = vld [vmem:[%s0 + $0x78] sm:$0xff]
    %v45 = vld [vmem:[%s1] sm:$0xff]
    %v46 = vld [vmem:[%s1 + $0x8] sm:$0xff]
    %v47 = vld [vmem:[%s2] sm:$0x1]
    %v49 = vperm.slane %v47, 0
    %vm51 = vcmask 130048
    %v53 = vsel %vm51, %v29, 0
    %v56 = vsel %vm51, %v30, 0
    %v59 = vsel %vm51, %v31, 0
    %v62 = vsel %vm51, %v32, 0
    %v65 = vsel %vm51, %v33, 0
    %v68 = vsel %vm51, %v34, 0
    %v71 = vsel %vm51, %v35, 0
    %v74 = vsel %vm51, %v36, 0
    %v77 = vsel %vm51, %v37, 0
    %v80 = vsel %vm51, %v38, 0
    %v83 = vsel %vm51, %v39, 0
    %v86 = vsel %vm51, %v40, 0
    %v89 = vsel %vm51, %v41, 0
    %v92 = vsel %vm51, %v42, 0
    %v95 = vsel %vm51, %v43, 0
    %v98 = vsel %vm51, %v44, 0
    %100 = vmatpush.msra.mxu0 0.0
    %101 = vmatpush.msra.mxu0 0.0
    %102 = vmatpush.msra.mxu0 0.0
    %103 = vmatpush.msra.mxu0 0.0
    %104 = vmatpush.msra.mxu0 0.0
    %105 = vmatpush.msra.mxu0 0.0
    %106 = vmatpush.msra.mxu0 0.0
    %107 = vmatpush.msra.mxu0 0.0
    %108 = vmatpush.msra.mxu0 0.0
    %109 = vmatpush.msra.mxu0 0.0
    %110 = vmatpush.msra.mxu0 0.0
    %111 = vmatpush.msra.mxu0 0.0
    %112 = vmatpush.msra.mxu0 0.0
    %113 = vmatpush.msra.mxu0 0.0
    %114 = vmatpush.msra.mxu0 %v46
    %115 = vmatpush.msra.mxu0 %v45
    %116 = vmatmul.f32.gmra.mxu0 %v53
    %v117 = vpop.f32.mrf.mxu0
    %v118 = vadd.f32 %v49, %v117
    %119 = vmatmul.f32.gmra.mxu0 %v56
    %v120 = vpop.f32.mrf.mxu0
    %v121 = vadd.f32 %v49, %v120
    %122 = vmatmul.f32.gmra.mxu0 %v59
    %v123 = vpop.f32.mrf.mxu0
    %v124 = vadd.f32 %v49, %v123
    %125 = vmatmul.f32.gmra.mxu0 %v62
    %v126 = vpop.f32.mrf.mxu0
    %v127 = vadd.f32 %v49, %v126
    %128 = vmatmul.f32.gmra.mxu0 %v65
    %v129 = vpop.f32.mrf.mxu0
    %v130 = vadd.f32 %v49, %v129
    %131 = vmatmul.f32.gmra.mxu0 %v68
    %v132 = vpop.f32.mrf.mxu0
    %v133 = vadd.f32 %v49, %v132
    %134 = vmatmul.f32.gmra.mxu0 %v71
    %v135 = vpop.f32.mrf.mxu0
    %v136 = vadd.f32 %v49, %v135
    %137 = vmatmul.f32.gmra.mxu0 %v74
    %v138 = vpop.f32.mrf.mxu0
    %v139 = vadd.f32 %v49, %v138
    %140 = vmatmul.f32.gmra.mxu0 %v77
    %v141 = vpop.f32.mrf.mxu0
    %v142 = vadd.f32 %v49, %v141
    %143 = vmatmul.f32.gmra.mxu0 %v80
    %v144 = vpop.f32.mrf.mxu0
    %v145 = vadd.f32 %v49, %v144
    %146 = vmatmul.f32.gmra.mxu0 %v83
    %v147 = vpop.f32.mrf.mxu0
    %v148 = vadd.f32 %v49, %v147
    %149 = vmatmul.f32.gmra.mxu0 %v86
    %v150 = vpop.f32.mrf.mxu0
    %v151 = vadd.f32 %v49, %v150
    %152 = vmatmul.f32.gmra.mxu0 %v89
    %v153 = vpop.f32.mrf.mxu0
    %v154 = vadd.f32 %v49, %v153
    %155 = vmatmul.f32.gmra.mxu0 %v92
    %v156 = vpop.f32.mrf.mxu0
    %v157 = vadd.f32 %v49, %v156
    %158 = vmatmul.f32.gmra.mxu0 %v95
    %v159 = vpop.f32.mrf.mxu0
    %v160 = vadd.f32 %v49, %v159
    %161 = vmatmul.f32.gmra.mxu0 %v98
    %v162 = vpop.f32.mrf.mxu0
    %v163 = vadd.f32 %v49, %v162
    %164 = vdwg.mxu0
    %v165 = vld [vmem:[%s3] sm:$0xff]
    %v166 = vld [vmem:[%s3 + $0x8] sm:$0xff]
    %v167 = vld [vmem:[%s3 + $0x10] sm:$0xff]
    %v168 = vld [vmem:[%s3 + $0x18] sm:$0xff]
    %v169 = vld [vmem:[%s4] sm:$0x1]
    %v171 = vperm.slane %v169, 0
    %vm173 = vcmask 261120
    %v175 = vsel %vm173, %v118, 0
    %v178 = vsel %vm173, %v121, 0
    %v181 = vsel %vm173, %v124, 0
    %v184 = vsel %vm173, %v127, 0
    %v187 = vsel %vm173, %v130, 0
    %v190 = vsel %vm173, %v133, 0
    %v193 = vsel %vm173, %v136, 0
    %v196 = vsel %vm173, %v139, 0
    %v199 = vsel %vm173, %v142, 0
    %v202 = vsel %vm173, %v145, 0
    %v205 = vsel %vm173, %v148, 0
    %v208 = vsel %vm173, %v151, 0
    %v211 = vsel %vm173, %v154, 0
    %v214 = vsel %vm173, %v157, 0
    %v217 = vsel %vm173, %v160, 0
    %v220 = vsel %vm173, %v163, 0
    %222 = vmatpush.msra.mxu0 0.0
    %223 = vmatpush.msra.mxu0 0.0
    %224 = vmatpush.msra.mxu0 0.0
    %225 = vmatpush.msra.mxu0 0.0
    %226 = vmatpush.msra.mxu0 0.0
    %227 = vmatpush.msra.mxu0 0.0
    %228 = vmatpush.msra.mxu0 0.0
    %229 = vmatpush.msra.mxu0 0.0
    %230 = vmatpush.msra.mxu0 0.0
    %231 = vmatpush.msra.mxu0 0.0
    %232 = vmatpush.msra.mxu0 0.0
    %233 = vmatpush.msra.mxu0 0.0
    %234 = vmatpush.msra.mxu0 %v168
    %235 = vmatpush.msra.mxu0 %v167
    %236 = vmatpush.msra.mxu0 %v166
    %237 = vmatpush.msra.mxu0 %v165
    %238 = vmatmul.f32.gmra.mxu0 %v175
    %v239 = vpop.f32.mrf.mxu0
    %v240 = vadd.f32 %v171, %v239
    %241 = vmatmul.f32.gmra.mxu0 %v178
    %v242 = vpop.f32.mrf.mxu0
    %v243 = vadd.f32 %v171, %v242
    %244 = vmatmul.f32.gmra.mxu0 %v181
    %v245 = vpop.f32.mrf.mxu0
    %v246 = vadd.f32 %v171, %v245
    %247 = vmatmul.f32.gmra.mxu0 %v184
    %v248 = vpop.f32.mrf.mxu0
    %v249 = vadd.f32 %v171, %v248
    %250 = vmatmul.f32.gmra.mxu0 %v187
    %v251 = vpop.f32.mrf.mxu0
    %v252 = vadd.f32 %v171, %v251
    %253 = vmatmul.f32.gmra.mxu0 %v190
    %v254 = vpop.f32.mrf.mxu0
    %v255 = vadd.f32 %v171, %v254
    %256 = vmatmul.f32.gmra.mxu0 %v193
    %v257 = vpop.f32.mrf.mxu0
    %v258 = vadd.f32 %v171, %v257
    %259 = vmatmul.f32.gmra.mxu0 %v196
    %v260 = vpop.f32.mrf.mxu0
    %v261 = vadd.f32 %v171, %v260
    %262 = vmatmul.f32.gmra.mxu0 %v199
    %v263 = vpop.f32.mrf.mxu0
    %v264 = vadd.f32 %v171, %v263
    %265 = vmatmul.f32.gmra.mxu0 %v202
    %v266 = vpop.f32.mrf.mxu0
    %v267 = vadd.f32 %v171, %v266
    %268 = vmatmul.f32.gmra.mxu0 %v205
    %v269 = vpop.f32.mrf.mxu0
    %v270 = vadd.f32 %v171, %v269
    %271 = vmatmul.f32.gmra.mxu0 %v208
    %v272 = vpop.f32.mrf.mxu0
    %v273 = vadd.f32 %v171, %v272
    %274 = vmatmul.f32.gmra.mxu0 %v211
    %v275 = vpop.f32.mrf.mxu0
    %v276 = vadd.f32 %v171, %v275
    %277 = vmatmul.f32.gmra.mxu0 %v214
    %v278 = vpop.f32.mrf.mxu0
    %v279 = vadd.f32 %v171, %v278
    %280 = vmatmul.f32.gmra.mxu0 %v217
    %v281 = vpop.f32.mrf.mxu0
    %v282 = vadd.f32 %v171, %v281
    %283 = vmatmul.f32.gmra.mxu0 %v220
    %v284 = vpop.f32.mrf.mxu0
    %v285 = vadd.f32 %v171, %v284
    %286 = vdwg.mxu0
    %v287 = vmax.f32 %v240, 0.0
    %v288 = vmax.f32 %v243, 0.0
    %v289 = vmax.f32 %v246, 0.0
    %v290 = vmax.f32 %v249, 0.0
    %v291 = vmax.f32 %v252, 0.0
    %v292 = vmax.f32 %v255, 0.0
    %v293 = vmax.f32 %v258, 0.0
    %v294 = vmax.f32 %v261, 0.0
    %v295 = vmax.f32 %v264, 0.0
    %v296 = vmax.f32 %v267, 0.0
    %v297 = vmax.f32 %v270, 0.0
    %v298 = vmax.f32 %v273, 0.0
    %v299 = vmax.f32 %v276, 0.0
    %v300 = vmax.f32 %v279, 0.0
    %v301 = vmax.f32 %v282, 0.0
    %v302 = vmax.f32 %v285, 0.0
    %s303 = scalar_lea.vmem %s3, 32
    %v304 = vld [vmem:[%s303] sm:$0xff]
    %v305 = vld [vmem:[%s303 + $0x8] sm:$0xff]
    %v306 = vld [vmem:[%s303 + $0x10] sm:$0xff]
    %v307 = vld [vmem:[%s303 + $0x18] sm:$0xff]
    %s308 = scalar_lea.vmem %s4, 1
    %v309 = vld [vmem:[%s308] sm:$0x1]
    %v311 = vperm.slane %v309, 0
    %v314 = vsel %vm173, %v287, 0
    %v317 = vsel %vm173, %v288, 0
    %v320 = vsel %vm173, %v289, 0
    %v323 = vsel %vm173, %v290, 0
    %v326 = vsel %vm173, %v291, 0
    %v329 = vsel %vm173, %v292, 0
    %v332 = vsel %vm173, %v293, 0
    %v335 = vsel %vm173, %v294, 0
    %v338 = vsel %vm173, %v295, 0
    %v341 = vsel %vm173, %v296, 0
    %v344 = vsel %vm173, %v297, 0
    %v347 = vsel %vm173, %v298, 0
    %v350 = vsel %vm173, %v299, 0
    %v353 = vsel %vm173, %v300, 0
    %v356 = vsel %vm173, %v301, 0
    %v359 = vsel %vm173, %v302, 0
    %361 = vmatpush.msra.mxu0 0.0
    %362 = vmatpush.msra.mxu0 0.0
    %363 = vmatpush.msra.mxu0 0.0
    %364 = vmatpush.msra.mxu0 0.0
    %365 = vmatpush.msra.mxu0 0.0
    %366 = vmatpush.msra.mxu0 0.0
    %367 = vmatpush.msra.mxu0 0.0
    %368 = vmatpush.msra.mxu0 0.0
    %369 = vmatpush.msra.mxu0 0.0
    %370 = vmatpush.msra.mxu0 0.0
    %371 = vmatpush.msra.mxu0 0.0
    %372 = vmatpush.msra.mxu0 0.0
    %373 = vmatpush.msra.mxu0 %v307
    %374 = vmatpush.msra.mxu0 %v306
    %375 = vmatpush.msra.mxu0 %v305
    %376 = vmatpush.msra.mxu0 %v304
    %377 = vmatmul.f32.gmra.mxu0 %v314
    %v378 = vpop.f32.mrf.mxu0
    %v379 = vadd.f32 %v311, %v378
    %380 = vmatmul.f32.gmra.mxu0 %v317
    %v381 = vpop.f32.mrf.mxu0
    %v382 = vadd.f32 %v311, %v381
    %383 = vmatmul.f32.gmra.mxu0 %v320
    %v384 = vpop.f32.mrf.mxu0
    %v385 = vadd.f32 %v311, %v384
    %386 = vmatmul.f32.gmra.mxu0 %v323
    %v387 = vpop.f32.mrf.mxu0
    %v388 = vadd.f32 %v311, %v387
    %389 = vmatmul.f32.gmra.mxu0 %v326
    %v390 = vpop.f32.mrf.mxu0
    %v391 = vadd.f32 %v311, %v390
    %392 = vmatmul.f32.gmra.mxu0 %v329
    %v393 = vpop.f32.mrf.mxu0
    %v394 = vadd.f32 %v311, %v393
    %395 = vmatmul.f32.gmra.mxu0 %v332
    %v396 = vpop.f32.mrf.mxu0
    %v397 = vadd.f32 %v311, %v396
    %398 = vmatmul.f32.gmra.mxu0 %v335
    %v399 = vpop.f32.mrf.mxu0
    %v400 = vadd.f32 %v311, %v399
    %401 = vmatmul.f32.gmra.mxu0 %v338
    %v402 = vpop.f32.mrf.mxu0
    %v403 = vadd.f32 %v311, %v402
    %404 = vmatmul.f32.gmra.mxu0 %v341
    %v405 = vpop.f32.mrf.mxu0
    %v406 = vadd.f32 %v311, %v405
    %407 = vmatmul.f32.gmra.mxu0 %v344
    %v408 = vpop.f32.mrf.mxu0
    %v409 = vadd.f32 %v311, %v408
    %410 = vmatmul.f32.gmra.mxu0 %v347
    %v411 = vpop.f32.mrf.mxu0
    %v412 = vadd.f32 %v311, %v411
    %413 = vmatmul.f32.gmra.mxu0 %v350
    %v414 = vpop.f32.mrf.mxu0
    %v415 = vadd.f32 %v311, %v414
    %416 = vmatmul.f32.gmra.mxu0 %v353
    %v417 = vpop.f32.mrf.mxu0
    %v418 = vadd.f32 %v311, %v417
    %419 = vmatmul.f32.gmra.mxu0 %v356
    %v420 = vpop.f32.mrf.mxu0
    %v421 = vadd.f32 %v311, %v420
    %422 = vmatmul.f32.gmra.mxu0 %v359
    %v423 = vpop.f32.mrf.mxu0
    %v424 = vadd.f32 %v311, %v423
    %425 = vdwg.mxu0
    %v426 = vmax.f32 %v379, 0.0
    %v427 = vmax.f32 %v382, 0.0
    %v428 = vmax.f32 %v385, 0.0
    %v429 = vmax.f32 %v388, 0.0
    %v430 = vmax.f32 %v391, 0.0
    %v431 = vmax.f32 %v394, 0.0
    %v432 = vmax.f32 %v397, 0.0
    %v433 = vmax.f32 %v400, 0.0
    %v434 = vmax.f32 %v403, 0.0
    %v435 = vmax.f32 %v406, 0.0
    %v436 = vmax.f32 %v409, 0.0
    %v437 = vmax.f32 %v412, 0.0
    %v438 = vmax.f32 %v415, 0.0
    %v439 = vmax.f32 %v418, 0.0
    %v440 = vmax.f32 %v421, 0.0
    %v441 = vmax.f32 %v424, 0.0
    %s442 = scalar_lea.vmem %s3, 64
    %v443 = vld [vmem:[%s442] sm:$0xff]
    %v444 = vld [vmem:[%s442 + $0x8] sm:$0xff]
    %v445 = vld [vmem:[%s442 + $0x10] sm:$0xff]
    %v446 = vld [vmem:[%s442 + $0x18] sm:$0xff]
    %s447 = scalar_lea.vmem %s4, 2
    %v448 = vld [vmem:[%s447] sm:$0x1]
    %v450 = vperm.slane %v448, 0
    %v453 = vsel %vm173, %v426, 0
    %v456 = vsel %vm173, %v427, 0
    %v459 = vsel %vm173, %v428, 0
    %v462 = vsel %vm173, %v429, 0
    %v465 = vsel %vm173, %v430, 0
    %v468 = vsel %vm173, %v431, 0
    %v471 = vsel %vm173, %v432, 0
    %v474 = vsel %vm173, %v433, 0
    %v477 = vsel %vm173, %v434, 0
    %v480 = vsel %vm173, %v435, 0
    %v483 = vsel %vm173, %v436, 0
    %v486 = vsel %vm173, %v437, 0
    %v489 = vsel %vm173, %v438, 0
    %v492 = vsel %vm173, %v439, 0
    %v495 = vsel %vm173, %v440, 0
    %v498 = vsel %vm173, %v441, 0
    %500 = vmatpush.msra.mxu0 0.0
    %501 = vmatpush.msra.mxu0 0.0
    %502 = vmatpush.msra.mxu0 0.0
    %503 = vmatpush.msra.mxu0 0.0
    %504 = vmatpush.msra.mxu0 0.0
    %505 = vmatpush.msra.mxu0 0.0
    %506 = vmatpush.msra.mxu0 0.0
    %507 = vmatpush.msra.mxu0 0.0
    %508 = vmatpush.msra.mxu0 0.0
    %509 = vmatpush.msra.mxu0 0.0
    %510 = vmatpush.msra.mxu0 0.0
    %511 = vmatpush.msra.mxu0 0.0
    %512 = vmatpush.msra.mxu0 %v446
    %513 = vmatpush.msra.mxu0 %v445
    %514 = vmatpush.msra.mxu0 %v444
    %515 = vmatpush.msra.mxu0 %v443
    %516 = vmatmul.f32.gmra.mxu0 %v453
    %v517 = vpop.f32.mrf.mxu0
    %v518 = vadd.f32 %v450, %v517
    %519 = vmatmul.f32.gmra.mxu0 %v456
    %v520 = vpop.f32.mrf.mxu0
    %v521 = vadd.f32 %v450, %v520
    %522 = vmatmul.f32.gmra.mxu0 %v459
    %v523 = vpop.f32.mrf.mxu0
    %v524 = vadd.f32 %v450, %v523
    %525 = vmatmul.f32.gmra.mxu0 %v462
    %v526 = vpop.f32.mrf.mxu0
    %v527 = vadd.f32 %v450, %v526
    %528 = vmatmul.f32.gmra.mxu0 %v465
    %v529 = vpop.f32.mrf.mxu0
    %v530 = vadd.f32 %v450, %v529
    %531 = vmatmul.f32.gmra.mxu0 %v468
    %v532 = vpop.f32.mrf.mxu0
    %v533 = vadd.f32 %v450, %v532
    %534 = vmatmul.f32.gmra.mxu0 %v471
    %v535 = vpop.f32.mrf.mxu0
    %v536 = vadd.f32 %v450, %v535
    %537 = vmatmul.f32.gmra.mxu0 %v474
    %v538 = vpop.f32.mrf.mxu0
    %v539 = vadd.f32 %v450, %v538
    %540 = vmatmul.f32.gmra.mxu0 %v477
    %v541 = vpop.f32.mrf.mxu0
    %v542 = vadd.f32 %v450, %v541
    %543 = vmatmul.f32.gmra.mxu0 %v480
    %v544 = vpop.f32.mrf.mxu0
    %v545 = vadd.f32 %v450, %v544
    %546 = vmatmul.f32.gmra.mxu0 %v483
    %v547 = vpop.f32.mrf.mxu0
    %v548 = vadd.f32 %v450, %v547
    %549 = vmatmul.f32.gmra.mxu0 %v486
    %v550 = vpop.f32.mrf.mxu0
    %v551 = vadd.f32 %v450, %v550
    %552 = vmatmul.f32.gmra.mxu0 %v489
    %v553 = vpop.f32.mrf.mxu0
    %v554 = vadd.f32 %v450, %v553
    %555 = vmatmul.f32.gmra.mxu0 %v492
    %v556 = vpop.f32.mrf.mxu0
    %v557 = vadd.f32 %v450, %v556
    %558 = vmatmul.f32.gmra.mxu0 %v495
    %v559 = vpop.f32.mrf.mxu0
    %v560 = vadd.f32 %v450, %v559
    %561 = vmatmul.f32.gmra.mxu0 %v498
    %v562 = vpop.f32.mrf.mxu0
    %v563 = vadd.f32 %v450, %v562
    %564 = vdwg.mxu0
    %v565 = vmax.f32 %v518, 0.0
    %v566 = vmax.f32 %v521, 0.0
    %v567 = vmax.f32 %v524, 0.0
    %v568 = vmax.f32 %v527, 0.0
    %v569 = vmax.f32 %v530, 0.0
    %v570 = vmax.f32 %v533, 0.0
    %v571 = vmax.f32 %v536, 0.0
    %v572 = vmax.f32 %v539, 0.0
    %v573 = vmax.f32 %v542, 0.0
    %v574 = vmax.f32 %v545, 0.0
    %v575 = vmax.f32 %v548, 0.0
    %v576 = vmax.f32 %v551, 0.0
    %v577 = vmax.f32 %v554, 0.0
    %v578 = vmax.f32 %v557, 0.0
    %v579 = vmax.f32 %v560, 0.0
    %v580 = vmax.f32 %v563, 0.0
    %v581 = vld [vmem:[%s5] sm:$0x1]
    %v583 = vperm.slane %v581, 0
    %v585 = vmul.f32 %v565, %v583
    %v586 = vmul.f32 %v566, %v583
    %v587 = vmul.f32 %v567, %v583
    %v588 = vmul.f32 %v568, %v583
    %v589 = vmul.f32 %v569, %v583
    %v590 = vmul.f32 %v570, %v583
    %v591 = vmul.f32 %v571, %v583
    %v592 = vmul.f32 %v572, %v583
    %v593 = vmul.f32 %v573, %v583
    %v594 = vmul.f32 %v574, %v583
    %v595 = vmul.f32 %v575, %v583
    %v596 = vmul.f32 %v576, %v583
    %v597 = vmul.f32 %v577, %v583
    %v598 = vmul.f32 %v578, %v583
    %v599 = vmul.f32 %v579, %v583
    %v600 = vmul.f32 %v580, %v583
    %v601 = vsel %vm173, %v585, 0.0
    %602 = vadd.xlane.f32.xlu0 %v601
    %v603 = vpop.xlane.xlu0 %602
    %v604 = vsel %vm173, %v586, 0.0
    %605 = vadd.xlane.f32.xlu0 %v604
    %v606 = vpop.xlane.xlu0 %605
    %v607 = vsel %vm173, %v587, 0.0
    %608 = vadd.xlane.f32.xlu0 %v607
    %v609 = vpop.xlane.xlu0 %608
    %v610 = vsel %vm173, %v588, 0.0
    %611 = vadd.xlane.f32.xlu0 %v610
    %v612 = vpop.xlane.xlu0 %611
    %v613 = vsel %vm173, %v589, 0.0
    %614 = vadd.xlane.f32.xlu0 %v613
    %v615 = vpop.xlane.xlu0 %614
    %v616 = vsel %vm173, %v590, 0.0
    %617 = vadd.xlane.f32.xlu0 %v616
    %v618 = vpop.xlane.xlu0 %617
    %v619 = vsel %vm173, %v591, 0.0
    %620 = vadd.xlane.f32.xlu0 %v619
    %v621 = vpop.xlane.xlu0 %620
    %v622 = vsel %vm173, %v592, 0.0
    %623 = vadd.xlane.f32.xlu0 %v622
    %v624 = vpop.xlane.xlu0 %623
    %v625 = vsel %vm173, %v593, 0.0
    %626 = vadd.xlane.f32.xlu0 %v625
    %v627 = vpop.xlane.xlu0 %626
    %v628 = vsel %vm173, %v594, 0.0
    %629 = vadd.xlane.f32.xlu0 %v628
    %v630 = vpop.xlane.xlu0 %629
    %v631 = vsel %vm173, %v595, 0.0
    %632 = vadd.xlane.f32.xlu0 %v631
    %v633 = vpop.xlane.xlu0 %632
    %v634 = vsel %vm173, %v596, 0.0
    %635 = vadd.xlane.f32.xlu0 %v634
    %v636 = vpop.xlane.xlu0 %635
    %v637 = vsel %vm173, %v597, 0.0
    %638 = vadd.xlane.f32.xlu0 %v637
    %v639 = vpop.xlane.xlu0 %638
    %v640 = vsel %vm173, %v598, 0.0
    %641 = vadd.xlane.f32.xlu0 %v640
    %v642 = vpop.xlane.xlu0 %641
    %v643 = vsel %vm173, %v599, 0.0
    %644 = vadd.xlane.f32.xlu0 %v643
    %v645 = vpop.xlane.xlu0 %644
    %v646 = vsel %vm173, %v600, 0.0
    %647 = vadd.xlane.f32.xlu0 %v646
    %v648 = vpop.xlane.xlu0 %647
    %v649 = vld [vmem:[#allocation2] sm:$0x1]
    %651 = vset.pattern.permute.xlu0 0
    %652 = vperm.xlu0 %651, %v649
    %v653 = vpop.permute.xlu0 %652
    %v655 = vperm.slane %v653, 0
    %v656 = vadd.f32 %v603, %v655
    %v657 = vadd.f32 %v606, %v655
    %v658 = vadd.f32 %v609, %v655
    %v659 = vadd.f32 %v612, %v655
    %v660 = vadd.f32 %v615, %v655
    %v661 = vadd.f32 %v618, %v655
    %v662 = vadd.f32 %v621, %v655
    %v663 = vadd.f32 %v624, %v655
    %v664 = vadd.f32 %v627, %v655
    %v665 = vadd.f32 %v630, %v655
    %v666 = vadd.f32 %v633, %v655
    %v667 = vadd.f32 %v636, %v655
    %v668 = vadd.f32 %v639, %v655
    %v669 = vadd.f32 %v642, %v655
    %v670 = vadd.f32 %v645, %v655
    %v671 = vadd.f32 %v648, %v655
    %v688 = vlaneseq
    %v689 = vand.u32 %v688, 127
    %v690 = vperm.slane %v656, %v689
    %v691 = vadd.s32 %v689, 4294967288
    %v692 = vperm.slane %v657, %v691
    %vm693 = vcmask 130112
    %v694 = vsel %vm693, %v692, %v690
    %v695 = vadd.s32 %v689, 4294967280
    %v696 = vperm.slane %v658, %v695
    %vm697 = vcmask 195712
    %v698 = vsel %vm697, %v696, %v694
    %v699 = vadd.s32 %v689, 4294967272
    %v700 = vperm.slane %v659, %v699
    %vm701 = vcmask 261312
    %v702 = vsel %vm701, %v700, %v698
    %v703 = vadd.s32 %v689, 4294967264
    %v704 = vperm.slane %v660, %v703
    %vm705 = vcmask 326912
    %v706 = vsel %vm705, %v704, %v702
    %v707 = vadd.s32 %v689, 4294967256
    %v708 = vperm.slane %v661, %v707
    %vm709 = vcmask 392512
    %v710 = vsel %vm709, %v708, %v706
    %v711 = vadd.s32 %v689, 4294967248
    %v712 = vperm.slane %v662, %v711
    %vm713 = vcmask 458112
    %v714 = vsel %vm713, %v712, %v710
    %v715 = vadd.s32 %v689, 4294967240
    %v716 = vperm.slane %v663, %v715
    %vm717 = vcmask 523712
    %v718 = vsel %vm717, %v716, %v714
    %v719 = vadd.s32 %v689, 4294967232
    %v720 = vperm.slane %v664, %v719
    %vm721 = vcmask 589312
    %v722 = vsel %vm721, %v720, %v718
    %v723 = vadd.s32 %v689, 4294967224
    %v724 = vperm.slane %v665, %v723
    %vm725 = vcmask 654912
    %v726 = vsel %vm725, %v724, %v722
    %v727 = vadd.s32 %v689, 4294967216
    %v728 = vperm.slane %v666, %v727
    %vm729 = vcmask 720512
    %v730 = vsel %vm729, %v728, %v726
    %v731 = vadd.s32 %v689, 4294967208
    %v732 = vperm.slane %v667, %v731
    %vm733 = vcmask 786112
    %v734 = vsel %vm733, %v732, %v730
    %v735 = vadd.s32 %v689, 4294967200
    %v736 = vperm.slane %v668, %v735
    %vm737 = vcmask 851712
    %v738 = vsel %vm737, %v736, %v734
    %v739 = vadd.s32 %v689, 4294967192
    %v740 = vperm.slane %v669, %v739
    %vm741 = vcmask 917312
    %v742 = vsel %vm741, %v740, %v738
    %v743 = vadd.s32 %v689, 4294967184
    %v744 = vperm.slane %v670, %v743
    %vm745 = vcmask 982912
    %v746 = vsel %vm745, %v744, %v742
    %v747 = vadd.s32 %v689, 4294967176
    %v748 = vperm.slane %v671, %v747
    %vm749 = vcmask 1048512
    %v750 = vsel %vm749, %v748, %v746
    %752 = vst [vmem:[#allocation3] sm:$0x1] %v750
    // Predicated region
    $region30: #{tpu_custom_call.1} parent=1 // pred_check
      _
    $region31: #{tpu_custom_call.1} parent=1 // pred_check_branch
      %754 = sbr.rel (0) target = $region33
    $region32: #{tpu_custom_call.1} parent=1 // pred_region
      %756 = vsyncadd [#allocation4], 0
      %s758 = sshll.u32 [#allocation3], 4
      %s759 = int_to_ptr.vmem [resolvable:$true] %s758
      %s760 = sshll.u32 %s7, 4
      %s761 = int_to_ptr.hbm [resolvable:$true] %s760
      %763 = dma.vmem_to_hbm [thread:$0]  %s759, 16, %s761, [#allocation4]
    $region33: #{tpu_custom_call.1} parent=1 // pred_fallthru
      _
    // Predicated region
    $region34: #{tpu_custom_call.1} parent=1 // pred_check
      _
    $region35: #{tpu_custom_call.1} parent=1 // pred_check_branch
      %765 = sbr.rel (0) target = $region37
    $region36: #{tpu_custom_call.1} parent=1 // pred_region
      %767 = dma.done [#allocation4], 16
    $region37: #{tpu_custom_call.1} parent=1 // pred_fallthru
      _
    %768 = vsyncpa [#allocation4], 1

</llo_original>
